<compile_context>
chip_gen: v5e
topology: v5e:2x2
jax: 0.10.0
libtpu: 0.0.40
codegen_flags: <defaults>
</compile_context>

<pallas_src>
import functools

import jax
import jax.numpy as jnp
from jax.experimental import pallas as pl
from jax.experimental.pallas import tpu as pltpu

NEG_SLOPE = 0.01  # torch.nn.LeakyReLU default negative_slope


# ---------------------------------------------------------------------------
# Fused per-sample kernel.
#   x_ref   : (T, CV)            input rows of sample n, CV = C_in*V
#   w2_ref  : (Kt*CV, C_out*V)   fully folded weight (VMEM resident)
#   bias_ref: (T_conv, C_out*V)  time-dependent bias field (VMEM resident)
#   o_ref   : (T_conv, C_out*V)  output rows (lane-dense)
#   xpad_ref: (T+2*pad, CV)      scratch: time-zero-padded LeakyReLU(x)
# ---------------------------------------------------------------------------
def _stgcn_fused_kernel(x_ref, w2_ref, bias_ref, o_ref, xpad_ref, *,
                        Kt, T, CV, T_conv, padding):
    # Zero only the 2*padding boundary rows (tiny), every step, so the result is
    # independent of how grid steps are sharded across TensorCores.
    if padding > 0:
        xpad_ref[0:padding, :] = jnp.zeros((padding, CV), jnp.float32)
        xpad_ref[T + padding:T + 2 * padding, :] = jnp.zeros((padding, CV),
                                                             jnp.float32)

    x = x_ref[...]
    xpad_ref[padding:padding + T, :] = jnp.where(x >= 0, x, NEG_SLOPE * x)

    # bias field already contains the tcn bias + validity-masked gcn bias.
    acc = bias_ref[...]
    # Kt temporal taps -> Kt register-accumulated MXU matmuls.  Weight slices are
    # sublane-aligned (multiples of CV); input slices are cheap shifted reads of
    # the small padded scratch.
    for dt in range(Kt):
        acc = acc + jnp.dot(xpad_ref[dt:dt + T_conv, :],
                            w2_ref[dt * CV:(dt + 1) * CV, :],
                            preferred_element_type=jnp.float32)
    o_ref[...] = acc.astype(o_ref.dtype)


def stgcn_block_forward(x, adj, wg, bg, wt, bt, *, padding, stride):
    """x:(N,C_in,T,V)  adj:(K,V,V)  wg:(K*C_out,C_in) [= gcn.conv.weight[:,:,0,0]]
    bg:(K*C_out,)  wt:(Kt,C_out,C_out) [wt[dt,o,i] == tcn.weight[o,i,dt,0]]  bt:(C_out,)
    Returns (N, C_out, T_out, V)."""
    N, C_in, T, V = x.shape
    K = adj.shape[0]
    C_out = wg.shape[0] // K
    Kt = wt.shape[0]
    f32 = jnp.float32
    CV = C_in * V
    T_pad = T + 2 * padding
    T_conv = T_pad - Kt + 1                     # stride-1 output length

    # ---------------- one-time weight prep (tiny, plain JAX) ----------------
    wg_k = wg.reshape(K, C_out, C_in)
    # A[ci, v, c, w] = sum_k wg[k, c, ci] * adj[k, v, w]
    a4 = jnp.einsum('koi,kvw->ivow', wg_k, adj)
    # Fully folded weight: W2[dt, ci, v, co, w] = sum_c wt[dt, co, c] * A[ci, v, c, w]
    w2 = jnp.einsum('doc,ivcw->divow', wt, a4).reshape(Kt * CV, C_out * V)
    # gcn bias pushed through the adjacency, then through the temporal taps.
    bias_y = jnp.einsum('kc,kw->cw', bg.reshape(K, C_out), adj.sum(axis=1))
    wb = jnp.einsum('doc,cw->dow', wt, bias_y)          # (Kt, C_out, V)
    # Time-dependent bias field: padded time rows of the gcn output are zero in
    # torch (no gcn bias there), so each tap contributes only where it lands on a
    # real time step.
    tpos = jnp.arange(T_conv)[None, :] + jnp.arange(Kt)[:, None] - padding
    valid = ((tpos >= 0) & (tpos < T)).astype(f32)      # (Kt, T_conv)
    bias_field = (bt[None, :, None]
                  + jnp.einsum('dt,dow->tow', valid, wb)).reshape(T_conv, C_out * V)

    # Input plumbing: (N, C_in, T, V) -> (N, T, C_in*V) rows (8 KB at test shapes).
    x_rows = jnp.transpose(x, (0, 2, 1, 3)).reshape(N, T, CV)

    kernel = functools.partial(_stgcn_fused_kernel, Kt=Kt, T=T, CV=CV,
                               T_conv=T_conv, padding=padding)
    out_rows = pl.pallas_call(
        kernel,
        out_shape=jax.ShapeDtypeStruct((N, T_conv, C_out * V), f32),
        grid=(N,),
        in_specs=[
            pl.BlockSpec((pl.Squeezed(), T, CV), lambda n: (n, 0, 0)),
            pl.BlockSpec((Kt * CV, C_out * V), lambda n: (0, 0)),   # resident
            pl.BlockSpec((T_conv, C_out * V), lambda n: (0, 0)),    # resident
        ],
        out_specs=pl.BlockSpec((pl.Squeezed(), T_conv, C_out * V),
                               lambda n: (n, 0, 0)),
        scratch_shapes=[pltpu.VMEM((T_pad, CV), f32)],
        compiler_params=pltpu.CompilerParams(
            dimension_semantics=("parallel",)),
    )(x_rows, w2, bias_field)

    # Output plumbing back to the module layout (64 KB at test shapes).
    out = out_rows.reshape(N, T_conv, C_out, V).transpose(0, 2, 1, 3)
    if stride > 1:
        # TODO(synk): build only the strided output rows in-kernel (saves a factor
        # of `stride` in matmul/store work); also note torch's int stride would
        # additionally stride the V axis.
        out = out[:, :, ::stride, :]
    return out


# --------------------------- pure-JAX reference ------------------------------
def ref_forward(x, adj, wg, bg, wt, bt, *, padding, stride):
    K = adj.shape[0]
    C_out = wg.shape[0] // K
    Kt = wt.shape[0]
    N, C_in, T, V = x.shape
    xr = jnp.where(x >= 0, x, NEG_SLOPE * x)
    z = jnp.einsum('oc,nctv->notv', wg, xr) + bg[None, :, None, None]
    z = z.reshape(N, K, C_out, T, V)
    y = jnp.einsum('nkctv,kvw->nctw', z, adj)
    yp = jnp.pad(y, ((0, 0), (0, 0), (padding, padding), (0, 0)))
    T_out = (T + 2 * padding - Kt) // stride + 1
    out = jnp.broadcast_to(bt[None, :, None, None], (N, C_out, T_out, V))
    for dt in range(Kt):
        ysl = yp[:, :, dt:dt + (T_out - 1) * stride + 1:stride, :]
        out = out + jnp.einsum('oc,nctv->notv', wt[dt], ysl)
    return out


if __name__ == "__main__":
    # StgcnBlock(dim_in=4, dim_out=32, kernel_size=(3, 3), padding=(1, 0), stride=1)
    N, C_in, T, V = 2, 4, 16, 16
    C_out = 32
    K = 3          # spatial kernel size = kernel_size[1] = adj.shape[0]
    Kt = 3         # temporal kernel size = kernel_size[0]
    padding = 1    # padding[0]
    stride = 1     # temporal stride

    key = jax.random.PRNGKey(0)
    ks = jax.random.split(key, 6)
    x   = jax.random.normal(ks[0], (N, C_in, T, V), jnp.float32)
    adj = jax.random.normal(ks[1], (K, V, V), jnp.float32) * 0.25
    wg  = jax.random.normal(ks[2], (K * C_out, C_in), jnp.float32) * 0.25  # gcn.conv.weight[:, :, 0, 0]
    bg  = jax.random.normal(ks[3], (K * C_out,), jnp.float32) * 0.1        # gcn.conv.bias
    wt  = jax.random.normal(ks[4], (Kt, C_out, C_out), jnp.float32) * 0.1  # tcn.weight[:, :, dt, 0] as (Kt, Co, Ci)
    bt  = jax.random.normal(ks[5], (C_out,), jnp.float32) * 0.1            # tcn.bias

    fwd = jax.jit(functools.partial(stgcn_block_forward,
                                    padding=padding, stride=stride))
    out = jax.block_until_ready(fwd(x, adj, wg, bg, wt, bt))

    ref = ref_forward(x, adj, wg, bg, wt, bt, padding=padding, stride=stride)
    assert out.shape == ref.shape == (N, C_out, T, V), (out.shape, ref.shape)
    max_err = float(jnp.max(jnp.abs(out - ref)))
    assert jnp.allclose(out, ref, atol=2e-4, rtol=2e-4), max_err
    print("KERNEL_OK")
</pallas_src>

<mosaic_0001>
module attributes {stable_mosaic.version = 11 : i64} {
  func.func @_stgcn_fused_kernel(%arg0: i32, %arg1: memref<1x16x64xf32, #tpu.memory_space<vmem>>, %arg2: memref<192x512xf32, #tpu.memory_space<vmem>>, %arg3: memref<16x512xf32, #tpu.memory_space<vmem>>, %arg4: memref<1x16x512xf32, #tpu.memory_space<vmem>>, %arg5: memref<18x64xf32, #tpu.memory_space<vmem>>) attributes {dimension_semantics = [#tpu.dimension_semantics<parallel>], iteration_bounds = array<i64: 2>, scalar_prefetch = 0 : i64, scratch_operands = 1 : i64, tpu.core_type = #tpu.core_type<tc>, window_params = [{transform_indices = @transform_0, window_bounds = array<i64: 1, 16, 64>}, {pipeline_mode = #tpu.pipeline_mode<synchronous>, transform_indices = @transform_1, window_bounds = array<i64: 192, 512>}, {pipeline_mode = #tpu.pipeline_mode<synchronous>, transform_indices = @transform_2, window_bounds = array<i64: 16, 512>}, {transform_indices = @transform_3, window_bounds = array<i64: 1, 16, 512>}]} {
    %cst = arith.constant 0.000000e+00 : f32
    %0 = vector.broadcast %cst : f32 to vector<1x64xf32>
    %c0 = arith.constant 0 : index
    %c0_0 = arith.constant 0 : index
    %1 = vector.load %arg5[%c0, %c0_0] : memref<18x64xf32, #tpu.memory_space<vmem>>, vector<1x64xf32>
    tpu.vector_store %arg5[%c0, %c0_0], %0 {strides = array<i32>} : memref<18x64xf32, #tpu.memory_space<vmem>>, vector<1x64xf32>,
    %cst_1 = arith.constant 0.000000e+00 : f32
    %2 = vector.broadcast %cst_1 : f32 to vector<1x64xf32>
    %c17 = arith.constant 17 : index
    %c0_2 = arith.constant 0 : index
    %3 = vector.load %arg5[%c17, %c0_2] : memref<18x64xf32, #tpu.memory_space<vmem>>, vector<1x64xf32>
    tpu.vector_store %arg5[%c17, %c0_2], %2 {strides = array<i32>} : memref<18x64xf32, #tpu.memory_space<vmem>>, vector<1x64xf32>,
    %c0_3 = arith.constant 0 : index
    %c0_4 = arith.constant 0 : index
    %c0_5 = arith.constant 0 : index
    %4 = vector.load %arg1[%c0_3, %c0_4, %c0_5] : memref<1x16x64xf32, #tpu.memory_space<vmem>>, vector<1x16x64xf32>
    %5 = vector.shape_cast %4 : vector<1x16x64xf32> to vector<16x64xf32>
    %cst_6 = arith.constant 0.000000e+00 : f32
    %6 = vector.broadcast %cst_6 : f32 to vector<16x64xf32>
    %7 = arith.cmpf oge, %5, %6 : vector<16x64xf32>
    %cst_7 = arith.constant 0.00999999977 : f32
    %8 = vector.broadcast %cst_7 : f32 to vector<16x64xf32>
    %9 = arith.mulf %8, %5 : vector<16x64xf32>
    %10 = arith.select %7, %5, %9 : vector<16x64xi1>, vector<16x64xf32>
    %c1 = arith.constant 1 : index
    %c0_8 = arith.constant 0 : index
    %11 = vector.load %arg5[%c1, %c0_8] : memref<18x64xf32, #tpu.memory_space<vmem>>, vector<16x64xf32>
    tpu.vector_store %arg5[%c1, %c0_8], %10 {strides = array<i32>} : memref<18x64xf32, #tpu.memory_space<vmem>>, vector<16x64xf32>,
    %c0_9 = arith.constant 0 : index
    %c0_10 = arith.constant 0 : index
    %12 = vector.load %arg3[%c0_9, %c0_10] : memref<16x512xf32, #tpu.memory_space<vmem>>, vector<16x512xf32>
    %c0_11 = arith.constant 0 : index
    %c0_12 = arith.constant 0 : index
    %13 = vector.load %arg5[%c0_11, %c0_12] : memref<18x64xf32, #tpu.memory_space<vmem>>, vector<16x64xf32>
    %c0_13 = arith.constant 0 : index
    %c0_14 = arith.constant 0 : index
    %14 = vector.load %arg2[%c0_13, %c0_14] : memref<192x512xf32, #tpu.memory_space<vmem>>, vector<64x512xf32>
    %cst_15 = arith.constant dense<0.000000e+00> : vector<16x512xf32>
    %15 = tpu.matmul %13, %14, %cst_15 {dimension_numbers = #tpu.dot_dimension_numbers<[1], [0], [0], [1], [0, 0, 1, 1], [], []>} : vector<16x64xf32>, vector<64x512xf32>, vector<16x512xf32> -> vector<16x512xf32>
    %16 = arith.addf %12, %15 : vector<16x512xf32>
    %c1_16 = arith.constant 1 : index
    %c0_17 = arith.constant 0 : index
    %17 = vector.load %arg5[%c1_16, %c0_17] : memref<18x64xf32, #tpu.memory_space<vmem>>, vector<16x64xf32>
    %c64 = arith.constant 64 : index
    %c0_18 = arith.constant 0 : index
    %18 = vector.load %arg2[%c64, %c0_18] : memref<192x512xf32, #tpu.memory_space<vmem>>, vector<64x512xf32>
    %cst_19 = arith.constant dense<0.000000e+00> : vector<16x512xf32>
    %19 = tpu.matmul %17, %18, %cst_19 {dimension_numbers = #tpu.dot_dimension_numbers<[1], [0], [0], [1], [0, 0, 1, 1], [], []>} : vector<16x64xf32>, vector<64x512xf32>, vector<16x512xf32> -> vector<16x512xf32>
    %20 = arith.addf %16, %19 : vector<16x512xf32>
    %c2 = arith.constant 2 : index
    %c0_20 = arith.constant 0 : index
    %21 = vector.load %arg5[%c2, %c0_20] : memref<18x64xf32, #tpu.memory_space<vmem>>, vector<16x64xf32>
    %c128 = arith.constant 128 : index
    %c0_21 = arith.constant 0 : index
    %22 = vector.load %arg2[%c128, %c0_21] : memref<192x512xf32, #tpu.memory_space<vmem>>, vector<64x512xf32>
    %cst_22 = arith.constant dense<0.000000e+00> : vector<16x512xf32>
    %23 = tpu.matmul %21, %22, %cst_22 {dimension_numbers = #tpu.dot_dimension_numbers<[1], [0], [0], [1], [0, 0, 1, 1], [], []>} : vector<16x64xf32>, vector<64x512xf32>, vector<16x512xf32> -> vector<16x512xf32>
    %24 = arith.addf %20, %23 : vector<16x512xf32>
    %c0_23 = arith.constant 0 : index
    %c0_24 = arith.constant 0 : index
    %c0_25 = arith.constant 0 : index
    %25 = vector.load %arg4[%c0_23, %c0_24, %c0_25] : memref<1x16x512xf32, #tpu.memory_space<vmem>>, vector<1x16x512xf32>
    %26 = vector.shape_cast %25 : vector<1x16x512xf32> to vector<16x512xf32>
    %27 = vector.shape_cast %24 : vector<16x512xf32> to vector<1x16x512xf32>
    tpu.vector_store %arg4[%c0_23, %c0_24, %c0_25], %27 {strides = array<i32>} : memref<1x16x512xf32, #tpu.memory_space<vmem>>, vector<1x16x512xf32>,
    return
  }
  func.func @transform_0(%arg0: i32) -> (i32, i32, i32) {
    %c0_i32 = arith.constant 0 : i32
    %c0_i32_0 = arith.constant 0 : i32
    %c0_i32_1 = arith.constant 0 : i32
    return %arg0, %c0_i32, %c0_i32_0 : i32, i32, i32
  }
  func.func @transform_1(%arg0: i32) -> (i32, i32) {
    %c0_i32 = arith.constant 0 : i32
    %c0_i32_0 = arith.constant 0 : i32
    %c0_i32_1 = arith.constant 0 : i32
    return %c0_i32, %c0_i32_0 : i32, i32
  }
  func.func @transform_2(%arg0: i32) -> (i32, i32) {
    %c0_i32 = arith.constant 0 : i32
    %c0_i32_0 = arith.constant 0 : i32
    %c0_i32_1 = arith.constant 0 : i32
    return %c0_i32, %c0_i32_0 : i32, i32
  }
  func.func @transform_3(%arg0: i32) -> (i32, i32, i32) {
    %c0_i32 = arith.constant 0 : i32
    %c0_i32_0 = arith.constant 0 : i32
    %c0_i32_1 = arith.constant 0 : i32
    return %arg0, %c0_i32, %c0_i32_0 : i32, i32, i32
  }
}

</mosaic_0001>

<llo_original>
// kernel: stgcn_block_forward.1
$region0: #{stgcn_block_forward.1}
  #allocation0 [shape = 'u32[]', space=smem, size = 0x4, offset = 0x4, fixed_abs, tag = 'smem constant byte address 0x4 - core index']
  #allocation1 [shape = 'u32[72,128]{1,0:T(1,128)}', space=vmem, size = 0x9000, scoped, tag = 'internal scratch']
  #allocation2 [shape = 'f32[18,64]{1,0:T(8,128)}', space=vmem, size = 0x3000, scoped, tag = 'scratch operand']
  %s0 = inlined_call_operand.vmem [shape: f32[2,16,64], index: 0, kind: input, shape index: {}]
  %s1 = inlined_call_operand.vmem [shape: f32[192,512], index: 1, kind: input, shape index: {}]
  %s2 = inlined_call_operand.vmem [shape: f32[16,512], index: 2, kind: input, shape index: {}]
  %s3 = inlined_call_operand.vmem [shape: f32[2,16,512], index: 3, kind: output, shape index: {}]
  %s4 = sld [smem:[#allocation0]]
  $region45: #{stgcn_block_forward.1} parent=0
    _
  %s6 = ssub.s32 1, %s4
  %s7 = scalar_select 0, %s6, %s4
  loop: start=0, step=1, limit=4
  $region2: #{stgcn_block_forward.1} parent=0 // loop_pre_header
    _
  $region3: #{stgcn_block_forward.1} parent=0 // loop_header
    %s9 = sphi 0, %s13
    %p10 = scmp.ge.s32.totalorder %s9, 4
    %s19 = sphi 0, %s21
    %s22 = sphi 0, %s19
    %s23 = sphi 0, %s22
    %s39 = sphi 0, %s23
    %s43 = sphi 0, %s43
    %s45 = sphi 0, %s43
    %s46 = sphi 0, %s45
    %s60 = sphi 0, %s46
    %s64 = sphi 0, %s64
    %s66 = sphi 0, %s64
    %s67 = sphi 0, %s66
    %s81 = sphi 0, %s67
    %s87 = sphi 0, %s89
    %s90 = sphi 0, %s87
    %s91 = sphi 0, %s90
    %s107 = sphi 0, %s91
  $region4: #{stgcn_block_forward.1} parent=0 // loop_header_branch
    %12 = sbr.rel (%p10) target = $region8
  $region5: #{stgcn_block_forward.1} parent=0 // loop_body
    %s14 = ssub.s32 %s9, 1
    %s15 = ssub.s32 %s9, 2
    %s16 = sadd.s32 %s9, 1
    %s17 = ssub.s32 %s9, %s16
    %p18 = scmp.eq.s32.totalorder %s17, 0
    %s20 = sadd.s32 %s19, 1
    %s21 = scalar_select %p18, %s19, %s20
    %p24 = pneg %p18
    %p25 = scmp.eq.s32.totalorder %s9, 1
    %p26 = por %p24, %p25
    %p27 = scmp.ne.s32.totalorder %s19, %s22
    %p28 = scmp.eq.s32.totalorder %s9, 0
    %p29 = por %p27, %p28
    %p30 = scmp.ne.s32.totalorder %s19, %s22
    %p31 = scmp.eq.s32.totalorder %s14, 1
    %p32 = por %p30, %p31
    %p33 = scmp.ne.s32.totalorder %s22, %s23
    %p34 = scmp.eq.s32.totalorder %s14, 0
    %p35 = por %p33, %p34
    %p36 = scmp.ne.s32.totalorder %s22, %s23
    %p37 = scmp.eq.s32.totalorder %s15, 1
    %p38 = por %p36, %p37
    %p40 = scmp.ne.s32.totalorder %s23, %s39
    %p41 = scmp.eq.s32.totalorder %s15, 0
    %p42 = por %p40, %p41
    %s44 = sadd.s32 %s43, 1
    %p47 = scmp.eq.s32.totalorder %s9, 1
    %p48 = scmp.ne.s32.totalorder %s43, %s45
    %p49 = scmp.eq.s32.totalorder %s9, 0
    %p50 = por %p48, %p49
    %p51 = scmp.ne.s32.totalorder %s43, %s45
    %p52 = scmp.eq.s32.totalorder %s14, 1
    %p53 = por %p51, %p52
    %p54 = scmp.ne.s32.totalorder %s45, %s46
    %p55 = scmp.eq.s32.totalorder %s14, 0
    %p56 = por %p54, %p55
    %p57 = scmp.ne.s32.totalorder %s45, %s46
    %p58 = scmp.eq.s32.totalorder %s15, 1
    %p59 = por %p57, %p58
    %p61 = scmp.ne.s32.totalorder %s46, %s60
    %p62 = scmp.eq.s32.totalorder %s15, 0
    %p63 = por %p61, %p62
    %s65 = sadd.s32 %s64, 1
    %p68 = scmp.eq.s32.totalorder %s9, 1
    %p69 = scmp.ne.s32.totalorder %s64, %s66
    %p70 = scmp.eq.s32.totalorder %s9, 0
    %p71 = por %p69, %p70
    %p72 = scmp.ne.s32.totalorder %s64, %s66
    %p73 = scmp.eq.s32.totalorder %s14, 1
    %p74 = por %p72, %p73
    %p75 = scmp.ne.s32.totalorder %s66, %s67
    %p76 = scmp.eq.s32.totalorder %s14, 0
    %p77 = por %p75, %p76
    %p78 = scmp.ne.s32.totalorder %s66, %s67
    %p79 = scmp.eq.s32.totalorder %s15, 1
    %p80 = por %p78, %p79
    %p82 = scmp.ne.s32.totalorder %s67, %s81
    %p83 = scmp.eq.s32.totalorder %s15, 0
    %p84 = por %p82, %p83
    %s85 = ssub.s32 %s9, %s16
    %p86 = scmp.eq.s32.totalorder %s85, 0
    %s88 = sadd.s32 %s87, 1
    %s89 = scalar_select %p86, %s87, %s88
    %p92 = pneg %p86
    %p93 = scmp.eq.s32.totalorder %s9, 1
    %p94 = por %p92, %p93
    %p95 = scmp.ne.s32.totalorder %s87, %s90
    %p96 = scmp.eq.s32.totalorder %s9, 0
    %p97 = por %p95, %p96
    %p98 = scmp.ne.s32.totalorder %s87, %s90
    %p99 = scmp.eq.s32.totalorder %s14, 1
    %p100 = por %p98, %p99
    %p101 = scmp.ne.s32.totalorder %s90, %s91
    %p102 = scmp.eq.s32.totalorder %s14, 0
    %p103 = por %p101, %p102
    %p104 = scmp.ne.s32.totalorder %s90, %s91
    %p105 = scmp.eq.s32.totalorder %s15, 1
    %p106 = por %p104, %p105
    %p108 = scmp.ne.s32.totalorder %s91, %s107
    %p109 = scmp.eq.s32.totalorder %s15, 0
    %p110 = por %p108, %p109
    %p111 = scmp.le.s32.totalorder 1, %s9
    %p112 = scmp.lt.s32.totalorder %s9, 3
    %p113 = pnand %p111, %p112
    %p114 = pneg %p113
    // Predicated region
    $region9: #{stgcn_block_forward.1} parent=5 // pred_check
      _
    $region10: #{stgcn_block_forward.1} parent=5 // pred_check_branch
      %116 = sbr.rel (%p113) target = $region12
    $region11: #{stgcn_block_forward.1} parent=5 // pred_region
      %s117 = ssub.s32 %s9, 1
      // Predicated region
      $region13: #{stgcn_block_forward.1} parent=11 // pred_check
        %p118 = pneg %p56
      $region14: #{stgcn_block_forward.1} parent=11 // pred_check_branch
        %120 = sbr.rel (%p118) target = $region16
      $region15: #{stgcn_block_forward.1} parent=11 // pred_region
        _
      $region16: #{stgcn_block_forward.1} parent=11 // pred_fallthru
        _
      // Predicated region
      $region17: #{stgcn_block_forward.1} parent=11 // pred_check
        %p121 = pneg %p77
      $region18: #{stgcn_block_forward.1} parent=11 // pred_check_branch
        %123 = sbr.rel (%p121) target = $region20
      $region19: #{stgcn_block_forward.1} parent=11 // pred_region
        _
      $region20: #{stgcn_block_forward.1} parent=11 // pred_fallthru
        _
    $region12: #{stgcn_block_forward.1} parent=5 // pred_fallthru
      _
    %p124 = scmp.lt.s32.totalorder %s9, 2
    // Predicated region
    $region21: #{stgcn_block_forward.1} parent=5 // pred_check
      %p125 = pneg %p124
    $region22: #{stgcn_block_forward.1} parent=5 // pred_check_branch
      %127 = sbr.rel (%p125) target = $region24
    $region23: #{stgcn_block_forward.1} parent=5 // pred_region
      // Predicated region
      $region25: #{stgcn_block_forward.1} parent=23 // pred_check
        %p128 = pneg %p29
      $region26: #{stgcn_block_forward.1} parent=23 // pred_check_branch
        %130 = sbr.rel (%p128) target = $region28
      $region27: #{stgcn_block_forward.1} parent=23 // pred_region
        %p131 = scmp.lt.s32.totalorder %s9, 1
        %s132 = scalar_select %p131, %s9, 1
        %s133 = smul.addr %s132, 2
        %s134 = smul.addr %s133, 8
        %s135 = scalar_lea.vmem %s0, %s134
      $region28: #{stgcn_block_forward.1} parent=23 // pred_fallthru
        _
    $region24: #{stgcn_block_forward.1} parent=5 // pred_fallthru
      _
    %p136 = scmp.le.s32.totalorder 1, %s9
    %p137 = scmp.lt.s32.totalorder %s9, 3
    %p138 = pnand %p136, %p137
    %p139 = pneg %p138
    // Predicated region
    $region29: #{stgcn_block_forward.1} parent=5 // pred_check
      _
    $region30: #{stgcn_block_forward.1} parent=5 // pred_check_branch
      %141 = sbr.rel (%p138) target = $region32
    $region31: #{stgcn_block_forward.1} parent=5 // pred_region
      %s142 = ssub.s32 %s9, 1
      %p143 = scmp.lt.s32.totalorder %s14, 1
      %s144 = scalar_select %p143, %s14, 1
      %s145 = smul.addr %s144, 2
      %s146 = smul.addr %s145, 8
      %s147 = scalar_lea.vmem %s0, %s146
      %p148 = pneg %p35
      %p149 = pneg %p32
      %p150 = pneg %p56
      %p151 = pneg %p53
      %p152 = pneg %p77
      %p153 = pneg %p74
      %p154 = pneg %p103
      %p155 = pneg %p100
      %p156 = scmp.lt.s32.totalorder %s14, 1
      %s157 = scalar_select %p156, %s14, 1
      %s158 = smul.addr %s157, 8
      %s159 = smul.addr %s158, 8
      %s160 = scalar_lea.vmem %s3, %s159
      %p161 = scmp.lt.s32.totalorder %s14, 1
      %s162 = scalar_select %p161, %s14, 1
      %s163 = smul.addr %s162, 2
      %s164 = smul.addr %s163, 8
      %s165 = scalar_lea.vmem %s0, %s164
      %p166 = scmp.lt.s32.totalorder %s14, 1
      %s167 = scalar_select %p166, %s14, 1
      %s168 = smul.addr %s167, 8
      %s169 = smul.addr %s168, 8
      %s170 = scalar_lea.vmem %s3, %s169
      %vm171 = vcmask 516096
      %172 = vst.msk [vmem:[#allocation2] sm:$0x1] %vm171, 0.0
      %173 = vst.msk [vmem:[#allocation2 + $0x11] sm:$0x1] %vm171, 0.0
      %v174 = vld [vmem:[%s165] sm:$0xff]
      %v175 = vld [vmem:[%s165 + $0x8] sm:$0xff]
      %vm176 = vcmp.ge.f32.partialorder %v174, 0.0
      %vm177 = vcmp.ge.f32.partialorder %v175, 0.0
      %v178 = vmul.f32 %v174, 0.01
      %v179 = vmul.f32 %v175, 0.01
      %v180 = vsel %vm176, %v174, %v178
      %v181 = vsel %vm177, %v175, %v179
      %vm182 = vcmask 523264
      %183 = vst.msk [vmem:[#allocation2 + $0x1] sm:$0xff] %vm182, %v180
      %184 = vst.msk [vmem:[#allocation2 + $0x9] sm:$0xff] %vm182, %v181
      %v185 = vld [vmem:[%s2] sm:$0xff]
      %v186 = vld [vmem:[%s2 + $0x8] sm:$0xff]
      %v187 = vld [vmem:[%s2 + $0x10] sm:$0xff]
      %v188 = vld [vmem:[%s2 + $0x18] sm:$0xff]
      %v189 = vld [vmem:[%s2 + $0x20] sm:$0xff]
      %v190 = vld [vmem:[%s2 + $0x28] sm:$0xff]
      %v191 = vld [vmem:[%s2 + $0x30] sm:$0xff]
      %v192 = vld [vmem:[%s2 + $0x38] sm:$0xff]
      %v193 = vld [vmem:[#allocation2] sm:$0xff]
      %v194 = vld [vmem:[#allocation2 + $0x8] sm:$0xff]
      %v195 = vld [vmem:[%s1] sm:$0xff]
      %v196 = vld [vmem:[%s1 + $0x8] sm:$0xff]
      %v197 = vld [vmem:[%s1 + $0x10] sm:$0xff]
      %v198 = vld [vmem:[%s1 + $0x18] sm:$0xff]
      %v199 = vld [vmem:[%s1 + $0x20] sm:$0xff]
      %v200 = vld [vmem:[%s1 + $0x28] sm:$0xff]
      %v201 = vld [vmem:[%s1 + $0x30] sm:$0xff]
      %v202 = vld [vmem:[%s1 + $0x38] sm:$0xff]
      %v203 = vld [vmem:[%s1 + $0x40] sm:$0xff]
      %v204 = vld [vmem:[%s1 + $0x48] sm:$0xff]
      %v205 = vld [vmem:[%s1 + $0x50] sm:$0xff]
      %v206 = vld [vmem:[%s1 + $0x58] sm:$0xff]
      %v207 = vld [vmem:[%s1 + $0x60] sm:$0xff]
      %v208 = vld [vmem:[%s1 + $0x68] sm:$0xff]
      %v209 = vld [vmem:[%s1 + $0x70] sm:$0xff]
      %v210 = vld [vmem:[%s1 + $0x78] sm:$0xff]
      %v211 = vld [vmem:[%s1 + $0x80] sm:$0xff]
      %v212 = vld [vmem:[%s1 + $0x88] sm:$0xff]
      %v213 = vld [vmem:[%s1 + $0x90] sm:$0xff]
      %v214 = vld [vmem:[%s1 + $0x98] sm:$0xff]
      %v215 = vld [vmem:[%s1 + $0xa0] sm:$0xff]
      %v216 = vld [vmem:[%s1 + $0xa8] sm:$0xff]
      %v217 = vld [vmem:[%s1 + $0xb0] sm:$0xff]
      %v218 = vld [vmem:[%s1 + $0xb8] sm:$0xff]
      %v219 = vld [vmem:[%s1 + $0xc0] sm:$0xff]
      %v220 = vld [vmem:[%s1 + $0xc8] sm:$0xff]
      %v221 = vld [vmem:[%s1 + $0xd0] sm:$0xff]
      %v222 = vld [vmem:[%s1 + $0xd8] sm:$0xff]
      %v223 = vld [vmem:[%s1 + $0xe0] sm:$0xff]
      %v224 = vld [vmem:[%s1 + $0xe8] sm:$0xff]
      %v225 = vld [vmem:[%s1 + $0xf0] sm:$0xff]
      %v226 = vld [vmem:[%s1 + $0xf8] sm:$0xff]
      %v228 = vsel %vm182, %v193, 0
      %v231 = vsel %vm182, %v194, 0
      %233 = vmatpush.msra.mxu0 0.0
      %234 = vmatpush.msra.mxu0 0.0
      %235 = vmatpush.msra.mxu0 0.0
      %236 = vmatpush.msra.mxu0 0.0
      %237 = vmatpush.msra.mxu0 0.0
      %238 = vmatpush.msra.mxu0 0.0
      %239 = vmatpush.msra.mxu0 0.0
      %240 = vmatpush.msra.mxu0 0.0
      %241 = vmatpush.msra.mxu0 %v223
      %242 = vmatpush.msra.mxu0 %v219
      %243 = vmatpush.msra.mxu0 %v215
      %244 = vmatpush.msra.mxu0 %v211
      %245 = vmatpush.msra.mxu0 %v207
      %246 = vmatpush.msra.mxu0 %v203
      %247 = vmatpush.msra.mxu0 %v199
      %248 = vmatpush.msra.mxu0 %v195
      %249 = vmatmul.f32.gmra.mxu0 %v228
      %v250 = vpop.f32.mrf.mxu0
      %v251 = vadd.f32 0.0, %v250
      %252 = vmatmul.f32.gmra.mxu0 %v231
      %v253 = vpop.f32.mrf.mxu0
      %v254 = vadd.f32 0.0, %v253
      %255 = vdwg.mxu0
      %256 = vmatpush.msra.mxu0 0.0
      %257 = vmatpush.msra.mxu0 0.0
      %258 = vmatpush.msra.mxu0 0.0
      %259 = vmatpush.msra.mxu0 0.0
      %260 = vmatpush.msra.mxu0 0.0
      %261 = vmatpush.msra.mxu0 0.0
      %262 = vmatpush.msra.mxu0 0.0
      %263 = vmatpush.msra.mxu0 0.0
      %264 = vmatpush.msra.mxu0 %v224
      %265 = vmatpush.msra.mxu0 %v220
      %266 = vmatpush.msra.mxu0 %v216
      %267 = vmatpush.msra.mxu0 %v212
      %268 = vmatpush.msra.mxu0 %v208
      %269 = vmatpush.msra.mxu0 %v204
      %270 = vmatpush.msra.mxu0 %v200
      %271 = vmatpush.msra.mxu0 %v196
      %272 = vmatmul.f32.gmra.mxu0 %v228
      %v273 = vpop.f32.mrf.mxu0
      %v274 = vadd.f32 0.0, %v273
      %275 = vmatmul.f32.gmra.mxu0 %v231
      %v276 = vpop.f32.mrf.mxu0
      %v277 = vadd.f32 0.0, %v276
      %278 = vdwg.mxu0
      %279 = vmatpush.msra.mxu0 0.0
      %280 = vmatpush.msra.mxu0 0.0
      %281 = vmatpush.msra.mxu0 0.0
      %282 = vmatpush.msra.mxu0 0.0
      %283 = vmatpush.msra.mxu0 0.0
      %284 = vmatpush.msra.mxu0 0.0
      %285 = vmatpush.msra.mxu0 0.0
      %286 = vmatpush.msra.mxu0 0.0
      %287 = vmatpush.msra.mxu0 %v225
      %288 = vmatpush.msra.mxu0 %v221
      %289 = vmatpush.msra.mxu0 %v217
      %290 = vmatpush.msra.mxu0 %v213
      %291 = vmatpush.msra.mxu0 %v209
      %292 = vmatpush.msra.mxu0 %v205
      %293 = vmatpush.msra.mxu0 %v201
      %294 = vmatpush.msra.mxu0 %v197
      %295 = vmatmul.f32.gmra.mxu0 %v228
      %v296 = vpop.f32.mrf.mxu0
      %v297 = vadd.f32 0.0, %v296
      %298 = vmatmul.f32.gmra.mxu0 %v231
      %v299 = vpop.f32.mrf.mxu0
      %v300 = vadd.f32 0.0, %v299
      %301 = vdwg.mxu0
      %302 = vmatpush.msra.mxu0 0.0
      %303 = vmatpush.msra.mxu0 0.0
      %304 = vmatpush.msra.mxu0 0.0
      %305 = vmatpush.msra.mxu0 0.0
      %306 = vmatpush.msra.mxu0 0.0
      %307 = vmatpush.msra.mxu0 0.0
      %308 = vmatpush.msra.mxu0 0.0
      %309 = vmatpush.msra.mxu0 0.0
      %310 = vmatpush.msra.mxu0 %v226
      %311 = vmatpush.msra.mxu0 %v222
      %312 = vmatpush.msra.mxu0 %v218
      %313 = vmatpush.msra.mxu0 %v214
      %314 = vmatpush.msra.mxu0 %v210
      %315 = vmatpush.msra.mxu0 %v206
      %316 = vmatpush.msra.mxu0 %v202
      %317 = vmatpush.msra.mxu0 %v198
      %318 = vmatmul.f32.gmra.mxu0 %v228
      %v319 = vpop.f32.mrf.mxu0
      %v320 = vadd.f32 0.0, %v319
      %321 = vmatmul.f32.gmra.mxu0 %v231
      %v322 = vpop.f32.mrf.mxu0
      %v323 = vadd.f32 0.0, %v322
      %324 = vdwg.mxu0
      %v325 = vadd.f32 %v185, %v251
      %v326 = vadd.f32 %v186, %v274
      %v327 = vadd.f32 %v187, %v297
      %v328 = vadd.f32 %v188, %v320
      %v329 = vadd.f32 %v189, %v254
      %v330 = vadd.f32 %v190, %v277
      %v331 = vadd.f32 %v191, %v300
      %v332 = vadd.f32 %v192, %v323
      %v333 = vld [vmem:[#allocation2 + $0x1] sm:$0xff]
      %v334 = vld [vmem:[#allocation2 + $0x9] sm:$0xff]
      %v335 = vld [vmem:[%s1 + $0x100] sm:$0xff]
      %v336 = vld [vmem:[%s1 + $0x108] sm:$0xff]
      %v337 = vld [vmem:[%s1 + $0x110] sm:$0xff]
      %v338 = vld [vmem:[%s1 + $0x118] sm:$0xff]
      %v339 = vld [vmem:[%s1 + $0x120] sm:$0xff]
      %v340 = vld [vmem:[%s1 + $0x128] sm:$0xff]
      %v341 = vld [vmem:[%s1 + $0x130] sm:$0xff]
      %v342 = vld [vmem:[%s1 + $0x138] sm:$0xff]
      %v343 = vld [vmem:[%s1 + $0x140] sm:$0xff]
      %v344 = vld [vmem:[%s1 + $0x148] sm:$0xff]
      %v345 = vld [vmem:[%s1 + $0x150] sm:$0xff]
      %v346 = vld [vmem:[%s1 + $0x158] sm:$0xff]
      %v347 = vld [vmem:[%s1 + $0x160] sm:$0xff]
      %v348 = vld [vmem:[%s1 + $0x168] sm:$0xff]
      %v349 = vld [vmem:[%s1 + $0x170] sm:$0xff]
      %v350 = vld [vmem:[%s1 + $0x178] sm:$0xff]
      %v351 = vld [vmem:[%s1 + $0x180] sm:$0xff]
      %v352 = vld [vmem:[%s1 + $0x188] sm:$0xff]
      %v353 = vld [vmem:[%s1 + $0x190] sm:$0xff]
      %v354 = vld [vmem:[%s1 + $0x198] sm:$0xff]
      %v355 = vld [vmem:[%s1 + $0x1a0] sm:$0xff]
      %v356 = vld [vmem:[%s1 + $0x1a8] sm:$0xff]
      %v357 = vld [vmem:[%s1 + $0x1b0] sm:$0xff]
      %v358 = vld [vmem:[%s1 + $0x1b8] sm:$0xff]
      %v359 = vld [vmem:[%s1 + $0x1c0] sm:$0xff]
      %v360 = vld [vmem:[%s1 + $0x1c8] sm:$0xff]
      %v361 = vld [vmem:[%s1 + $0x1d0] sm:$0xff]
      %v362 = vld [vmem:[%s1 + $0x1d8] sm:$0xff]
      %v363 = vld [vmem:[%s1 + $0x1e0] sm:$0xff]
      %v364 = vld [vmem:[%s1 + $0x1e8] sm:$0xff]
      %v365 = vld [vmem:[%s1 + $0x1f0] sm:$0xff]
      %v366 = vld [vmem:[%s1 + $0x1f8] sm:$0xff]
      %v368 = vsel %vm182, %v333, 0
      %v371 = vsel %vm182, %v334, 0
      %373 = vmatpush.msra.mxu0 0.0
      %374 = vmatpush.msra.mxu0 0.0
      %375 = vmatpush.msra.mxu0 0.0
      %376 = vmatpush.msra.mxu0 0.0
      %377 = vmatpush.msra.mxu0 0.0
      %378 = vmatpush.msra.mxu0 0.0
      %379 = vmatpush.msra.mxu0 0.0
      %380 = vmatpush.msra.mxu0 0.0
      %381 = vmatpush.msra.mxu0 %v363
      %382 = vmatpush.msra.mxu0 %v359
      %383 = vmatpush.msra.mxu0 %v355
      %384 = vmatpush.msra.mxu0 %v351
      %385 = vmatpush.msra.mxu0 %v347
      %386 = vmatpush.msra.mxu0 %v343
      %387 = vmatpush.msra.mxu0 %v339
      %388 = vmatpush.msra.mxu0 %v335
      %389 = vmatmul.f32.gmra.mxu0 %v368
      %v390 = vpop.f32.mrf.mxu0
      %v391 = vadd.f32 0.0, %v390
      %392 = vmatmul.f32.gmra.mxu0 %v371
      %v393 = vpop.f32.mrf.mxu0
      %v394 = vadd.f32 0.0, %v393
      %395 = vdwg.mxu0
      %396 = vmatpush.msra.mxu0 0.0
      %397 = vmatpush.msra.mxu0 0.0
      %398 = vmatpush.msra.mxu0 0.0
      %399 = vmatpush.msra.mxu0 0.0
      %400 = vmatpush.msra.mxu0 0.0
      %401 = vmatpush.msra.mxu0 0.0
      %402 = vmatpush.msra.mxu0 0.0
      %403 = vmatpush.msra.mxu0 0.0
      %404 = vmatpush.msra.mxu0 %v364
      %405 = vmatpush.msra.mxu0 %v360
      %406 = vmatpush.msra.mxu0 %v356
      %407 = vmatpush.msra.mxu0 %v352
      %408 = vmatpush.msra.mxu0 %v348
      %409 = vmatpush.msra.mxu0 %v344
      %410 = vmatpush.msra.mxu0 %v340
      %411 = vmatpush.msra.mxu0 %v336
      %412 = vmatmul.f32.gmra.mxu0 %v368
      %v413 = vpop.f32.mrf.mxu0
      %v414 = vadd.f32 0.0, %v413
      %415 = vmatmul.f32.gmra.mxu0 %v371
      %v416 = vpop.f32.mrf.mxu0
      %v417 = vadd.f32 0.0, %v416
      %418 = vdwg.mxu0
      %419 = vmatpush.msra.mxu0 0.0
      %420 = vmatpush.msra.mxu0 0.0
      %421 = vmatpush.msra.mxu0 0.0
      %422 = vmatpush.msra.mxu0 0.0
      %423 = vmatpush.msra.mxu0 0.0
      %424 = vmatpush.msra.mxu0 0.0
      %425 = vmatpush.msra.mxu0 0.0
      %426 = vmatpush.msra.mxu0 0.0
      %427 = vmatpush.msra.mxu0 %v365
      %428 = vmatpush.msra.mxu0 %v361
      %429 = vmatpush.msra.mxu0 %v357
      %430 = vmatpush.msra.mxu0 %v353
      %431 = vmatpush.msra.mxu0 %v349
      %432 = vmatpush.msra.mxu0 %v345
      %433 = vmatpush.msra.mxu0 %v341
      %434 = vmatpush.msra.mxu0 %v337
      %435 = vmatmul.f32.gmra.mxu0 %v368
      %v436 = vpop.f32.mrf.mxu0
      %v437 = vadd.f32 0.0, %v436
      %438 = vmatmul.f32.gmra.mxu0 %v371
      %v439 = vpop.f32.mrf.mxu0
      %v440 = vadd.f32 0.0, %v439
      %441 = vdwg.mxu0
      %442 = vmatpush.msra.mxu0 0.0
      %443 = vmatpush.msra.mxu0 0.0
      %444 = vmatpush.msra.mxu0 0.0
      %445 = vmatpush.msra.mxu0 0.0
      %446 = vmatpush.msra.mxu0 0.0
      %447 = vmatpush.msra.mxu0 0.0
      %448 = vmatpush.msra.mxu0 0.0
      %449 = vmatpush.msra.mxu0 0.0
      %450 = vmatpush.msra.mxu0 %v366
      %451 = vmatpush.msra.mxu0 %v362
      %452 = vmatpush.msra.mxu0 %v358
      %453 = vmatpush.msra.mxu0 %v354
      %454 = vmatpush.msra.mxu0 %v350
      %455 = vmatpush.msra.mxu0 %v346
      %456 = vmatpush.msra.mxu0 %v342
      %457 = vmatpush.msra.mxu0 %v338
      %458 = vmatmul.f32.gmra.mxu0 %v368
      %v459 = vpop.f32.mrf.mxu0
      %v460 = vadd.f32 0.0, %v459
      %461 = vmatmul.f32.gmra.mxu0 %v371
      %v462 = vpop.f32.mrf.mxu0
      %v463 = vadd.f32 0.0, %v462
      %464 = vdwg.mxu0
      %v465 = vadd.f32 %v325, %v391
      %v466 = vadd.f32 %v326, %v414
      %v467 = vadd.f32 %v327, %v437
      %v468 = vadd.f32 %v328, %v460
      %v469 = vadd.f32 %v329, %v394
      %v470 = vadd.f32 %v330, %v417
      %v471 = vadd.f32 %v331, %v440
      %v472 = vadd.f32 %v332, %v463
      %v473 = vld [vmem:[#allocation2 + $0x2] sm:$0xff]
      %v474 = vld [vmem:[#allocation2 + $0xa] sm:$0xff]
      %v475 = vld [vmem:[%s1 + $0x200] sm:$0xff]
      %v476 = vld [vmem:[%s1 + $0x208] sm:$0xff]
      %v477 = vld [vmem:[%s1 + $0x210] sm:$0xff]
      %v478 = vld [vmem:[%s1 + $0x218] sm:$0xff]
      %v479 = vld [vmem:[%s1 + $0x220] sm:$0xff]
      %v480 = vld [vmem:[%s1 + $0x228] sm:$0xff]
      %v481 = vld [vmem:[%s1 + $0x230] sm:$0xff]
      %v482 = vld [vmem:[%s1 + $0x238] sm:$0xff]
      %v483 = vld [vmem:[%s1 + $0x240] sm:$0xff]
      %v484 = vld [vmem:[%s1 + $0x248] sm:$0xff]
      %v485 = vld [vmem:[%s1 + $0x250] sm:$0xff]
      %v486 = vld [vmem:[%s1 + $0x258] sm:$0xff]
      %v487 = vld [vmem:[%s1 + $0x260] sm:$0xff]
      %v488 = vld [vmem:[%s1 + $0x268] sm:$0xff]
      %v489 = vld [vmem:[%s1 + $0x270] sm:$0xff]
      %v490 = vld [vmem:[%s1 + $0x278] sm:$0xff]
      %v491 = vld [vmem:[%s1 + $0x280] sm:$0xff]
      %v492 = vld [vmem:[%s1 + $0x288] sm:$0xff]
      %v493 = vld [vmem:[%s1 + $0x290] sm:$0xff]
      %v494 = vld [vmem:[%s1 + $0x298] sm:$0xff]
      %v495 = vld [vmem:[%s1 + $0x2a0] sm:$0xff]
      %v496 = vld [vmem:[%s1 + $0x2a8] sm:$0xff]
      %v497 = vld [vmem:[%s1 + $0x2b0] sm:$0xff]
      %v498 = vld [vmem:[%s1 + $0x2b8] sm:$0xff]
      %v499 = vld [vmem:[%s1 + $0x2c0] sm:$0xff]
      %v500 = vld [vmem:[%s1 + $0x2c8] sm:$0xff]
      %v501 = vld [vmem:[%s1 + $0x2d0] sm:$0xff]
      %v502 = vld [vmem:[%s1 + $0x2d8] sm:$0xff]
      %v503 = vld [vmem:[%s1 + $0x2e0] sm:$0xff]
      %v504 = vld [vmem:[%s1 + $0x2e8] sm:$0xff]
      %v505 = vld [vmem:[%s1 + $0x2f0] sm:$0xff]
      %v506 = vld [vmem:[%s1 + $0x2f8] sm:$0xff]
      %v508 = vsel %vm182, %v473, 0
      %v511 = vsel %vm182, %v474, 0
      %513 = vmatpush.msra.mxu0 0.0
      %514 = vmatpush.msra.mxu0 0.0
      %515 = vmatpush.msra.mxu0 0.0
      %516 = vmatpush.msra.mxu0 0.0
      %517 = vmatpush.msra.mxu0 0.0
      %518 = vmatpush.msra.mxu0 0.0
      %519 = vmatpush.msra.mxu0 0.0
      %520 = vmatpush.msra.mxu0 0.0
      %521 = vmatpush.msra.mxu0 %v503
      %522 = vmatpush.msra.mxu0 %v499
      %523 = vmatpush.msra.mxu0 %v495
      %524 = vmatpush.msra.mxu0 %v491
      %525 = vmatpush.msra.mxu0 %v487
      %526 = vmatpush.msra.mxu0 %v483
      %527 = vmatpush.msra.mxu0 %v479
      %528 = vmatpush.msra.mxu0 %v475
      %529 = vmatmul.f32.gmra.mxu0 %v508
      %v530 = vpop.f32.mrf.mxu0
      %v531 = vadd.f32 0.0, %v530
      %532 = vmatmul.f32.gmra.mxu0 %v511
      %v533 = vpop.f32.mrf.mxu0
      %v534 = vadd.f32 0.0, %v533
      %535 = vdwg.mxu0
      %536 = vmatpush.msra.mxu0 0.0
      %537 = vmatpush.msra.mxu0 0.0
      %538 = vmatpush.msra.mxu0 0.0
      %539 = vmatpush.msra.mxu0 0.0
      %540 = vmatpush.msra.mxu0 0.0
      %541 = vmatpush.msra.mxu0 0.0
      %542 = vmatpush.msra.mxu0 0.0
      %543 = vmatpush.msra.mxu0 0.0
      %544 = vmatpush.msra.mxu0 %v504
      %545 = vmatpush.msra.mxu0 %v500
      %546 = vmatpush.msra.mxu0 %v496
      %547 = vmatpush.msra.mxu0 %v492
      %548 = vmatpush.msra.mxu0 %v488
      %549 = vmatpush.msra.mxu0 %v484
      %550 = vmatpush.msra.mxu0 %v480
      %551 = vmatpush.msra.mxu0 %v476
      %552 = vmatmul.f32.gmra.mxu0 %v508
      %v553 = vpop.f32.mrf.mxu0
      %v554 = vadd.f32 0.0, %v553
      %555 = vmatmul.f32.gmra.mxu0 %v511
      %v556 = vpop.f32.mrf.mxu0
      %v557 = vadd.f32 0.0, %v556
      %558 = vdwg.mxu0
      %559 = vmatpush.msra.mxu0 0.0
      %560 = vmatpush.msra.mxu0 0.0
      %561 = vmatpush.msra.mxu0 0.0
      %562 = vmatpush.msra.mxu0 0.0
      %563 = vmatpush.msra.mxu0 0.0
      %564 = vmatpush.msra.mxu0 0.0
      %565 = vmatpush.msra.mxu0 0.0
      %566 = vmatpush.msra.mxu0 0.0
      %567 = vmatpush.msra.mxu0 %v505
      %568 = vmatpush.msra.mxu0 %v501
      %569 = vmatpush.msra.mxu0 %v497
      %570 = vmatpush.msra.mxu0 %v493
      %571 = vmatpush.msra.mxu0 %v489
      %572 = vmatpush.msra.mxu0 %v485
      %573 = vmatpush.msra.mxu0 %v481
      %574 = vmatpush.msra.mxu0 %v477
      %575 = vmatmul.f32.gmra.mxu0 %v508
      %v576 = vpop.f32.mrf.mxu0
      %v577 = vadd.f32 0.0, %v576
      %578 = vmatmul.f32.gmra.mxu0 %v511
      %v579 = vpop.f32.mrf.mxu0
      %v580 = vadd.f32 0.0, %v579
      %581 = vdwg.mxu0
      %582 = vmatpush.msra.mxu0 0.0
      %583 = vmatpush.msra.mxu0 0.0
      %584 = vmatpush.msra.mxu0 0.0
      %585 = vmatpush.msra.mxu0 0.0
      %586 = vmatpush.msra.mxu0 0.0
      %587 = vmatpush.msra.mxu0 0.0
      %588 = vmatpush.msra.mxu0 0.0
      %589 = vmatpush.msra.mxu0 0.0
      %590 = vmatpush.msra.mxu0 %v506
      %591 = vmatpush.msra.mxu0 %v502
      %592 = vmatpush.msra.mxu0 %v498
      %593 = vmatpush.msra.mxu0 %v494
      %594 = vmatpush.msra.mxu0 %v490
      %595 = vmatpush.msra.mxu0 %v486
      %596 = vmatpush.msra.mxu0 %v482
      %597 = vmatpush.msra.mxu0 %v478
      %598 = vmatmul.f32.gmra.mxu0 %v508
      %v599 = vpop.f32.mrf.mxu0
      %v600 = vadd.f32 0.0, %v599
      %601 = vmatmul.f32.gmra.mxu0 %v511
      %v602 = vpop.f32.mrf.mxu0
      %v603 = vadd.f32 0.0, %v602
      %604 = vdwg.mxu0
      %v605 = vadd.f32 %v465, %v531
      %v606 = vadd.f32 %v466, %v554
      %v607 = vadd.f32 %v467, %v577
      %v608 = vadd.f32 %v468, %v600
      %v609 = vadd.f32 %v469, %v534
      %v610 = vadd.f32 %v470, %v557
      %v611 = vadd.f32 %v471, %v580
      %v612 = vadd.f32 %v472, %v603
      %613 = vst [vmem:[%s170] sm:$0xff] %v605
      %614 = vst [vmem:[%s170 + $0x8] sm:$0xff] %v606
      %615 = vst [vmem:[%s170 + $0x10] sm:$0xff] %v607
      %616 = vst [vmem:[%s170 + $0x18] sm:$0xff] %v608
      %617 = vst [vmem:[%s170 + $0x20] sm:$0xff] %v609
      %618 = vst [vmem:[%s170 + $0x28] sm:$0xff] %v610
      %619 = vst [vmem:[%s170 + $0x30] sm:$0xff] %v611
      %620 = vst [vmem:[%s170 + $0x38] sm:$0xff] %v612
      %p621 = scmp.lt.s32.totalorder %s14, 1
      %s622 = scalar_select %p621, %s14, 1
      %s623 = smul.addr %s622, 8
      %s624 = smul.addr %s623, 8
      %s625 = scalar_lea.vmem %s3, %s624
      // Predicated region
      $region33: #{stgcn_block_forward.1} parent=31 // pred_check
        %p626 = pneg %p100
      $region34: #{stgcn_block_forward.1} parent=31 // pred_check_branch
        %628 = sbr.rel (%p626) target = $region36
      $region35: #{stgcn_block_forward.1} parent=31 // pred_region
        _
      $region36: #{stgcn_block_forward.1} parent=31 // pred_fallthru
        _
    $region32: #{stgcn_block_forward.1} parent=5 // pred_fallthru
      _
    %p629 = scmp.le.s32.totalorder 2, %s9
    // Predicated region
    $region37: #{stgcn_block_forward.1} parent=5 // pred_check
      %p630 = pneg %p629
    $region38: #{stgcn_block_forward.1} parent=5 // pred_check_branch
      %632 = sbr.rel (%p630) target = $region40
    $region39: #{stgcn_block_forward.1} parent=5 // pred_region
      %s633 = ssub.s32 %s9, 2
      // Predicated region
      $region41: #{stgcn_block_forward.1} parent=39 // pred_check
        %p634 = pneg %p106
      $region42: #{stgcn_block_forward.1} parent=39 // pred_check_branch
        %636 = sbr.rel (%p634) target = $region44
      $region43: #{stgcn_block_forward.1} parent=39 // pred_region
        %p637 = scmp.lt.s32.totalorder %s15, 1
        %s638 = scalar_select %p637, %s15, 1
        %s639 = smul.addr %s638, 8
        %s640 = smul.addr %s639, 8
        %s641 = scalar_lea.vmem %s3, %s640
      $region44: #{stgcn_block_forward.1} parent=39 // pred_fallthru
        _
    $region40: #{stgcn_block_forward.1} parent=5 // pred_fallthru
      _
  $region6: #{stgcn_block_forward.1} parent=0 // loop_footer
    %s13 = sadd.s32 1, %s9
  $region7: #{stgcn_block_forward.1} parent=0 // loop_footer_branch
    %8 = sbr.rel target = $region3
  $region8: #{stgcn_block_forward.1} parent=0 // loop_exit
    _

</llo_original>
